<compile_context>
chip_gen: v5e
topology: v5e:2x2
jax: 0.10.0
libtpu: 0.0.40
codegen_flags: <defaults>
</compile_context>

<pallas_src>
import functools

import jax
import jax.numpy as jnp
from jax import lax
from jax.experimental import pallas as pl
from jax.experimental.pallas import tpu as pltpu


def _double_conv_kernel(x_ref, w1_ref, b1_ref, w2_ref, b2_ref, o_ref,
                        xpad_ref, mpad_ref, *, H, W, Cin, Cmid, Cout):
    """Fused DoubleConv for one batch element (lane-dense layout).

    x_ref:    (1, H, W*Cin)            input tile, lane-dense (bf16)
    w1_ref:   (3, (W+2)*Cin, W*Cmid)   conv1 banded weights, BN1 scale folded (bf16)
    b1_ref:   (1, W*Cmid)              BN1 shift, tiled per-pixel (f32)
    w2_ref:   (3, (W+2)*Cmid, W*Cout)  conv2 banded weights, BN2 scale folded (bf16)
    b2_ref:   (1, W*Cout)              BN2 shift, tiled per-pixel (f32)
    o_ref:    (1, H, W*Cout)           lane-dense output tile
    xpad_ref: (H+2, (W+2)*Cin)         VMEM scratch: zero-halo padded input
    mpad_ref: (H+2, (W+2)*Cmid)        VMEM scratch: zero-halo padded intermediate
    """
    f32 = jnp.float32

    def zero_halo(pad_ref, c):
        # Only the 1-pixel halo needs zeroing; the interior is fully overwritten each
        # grid step.  Keeps vst pressure minimal vs. a full-scratch zero-fill.
        row = jnp.zeros((1, (W + 2) * c), pad_ref.dtype)
        pad_ref[pl.ds(0, 1), :] = row                       # top halo row
        pad_ref[pl.ds(H + 1, 1), :] = row                   # bottom halo row
        col = jnp.zeros((H, c), pad_ref.dtype)
        pad_ref[pl.ds(1, H), pl.ds(0, c)] = col             # left halo column
        pad_ref[pl.ds(1, H), pl.ds((W + 1) * c, c)] = col   # right halo column

    zero_halo(xpad_ref, Cin)
    zero_halo(mpad_ref, Cmid)

    # Stage the input tile into the interior of the padded scratch (in-VMEM padding,
    # no HBM-side jnp.pad; both sides are lane-dense (H, W*Cin) -> no reshape).
    xpad_ref[pl.ds(1, H), pl.ds(Cin, W * Cin)] = x_ref[0].astype(xpad_ref.dtype)

    def conv3x3_shift_relu(pad_ref, wb_ref, b_ref):
        # 3x3 conv as 3 banded matmuls (one per ky row offset):
        #   out[y, x*Co + co] = sum_ky  pad[y+ky, :] @ Wband[ky]
        # The LHS is loaded directly in its lane-dense layout (no im2col relayout);
        # bf16 operands on the MXU, f32 accumulation and epilogue (v5e-safe).
        acc = jnp.dot(pad_ref[pl.ds(0, H), :], wb_ref[0], preferred_element_type=f32)
        acc = acc + jnp.dot(pad_ref[pl.ds(1, H), :], wb_ref[1],
                            preferred_element_type=f32)
        acc = acc + jnp.dot(pad_ref[pl.ds(2, H), :], wb_ref[2],
                            preferred_element_type=f32)
        # BN scale already folded into the weights; only the shift + ReLU remain.
        return jnp.maximum(acc + b_ref[...], 0.0)            # (H, W*Co) f32

    # conv1 + BN1 + ReLU -> padded intermediate kept in VMEM (never touches HBM).
    y1 = conv3x3_shift_relu(xpad_ref, w1_ref, b1_ref)         # (H, W*Cmid) f32
    mpad_ref[pl.ds(1, H), pl.ds(Cmid, W * Cmid)] = y1.astype(mpad_ref.dtype)

    # conv2 + BN2 + ReLU -> lane-dense (1, H, W*Cout) store.
    y2 = conv3x3_shift_relu(mpad_ref, w2_ref, b2_ref)         # (H, W*Cout) f32
    o_ref[...] = y2[None].astype(o_ref.dtype)
    # Dropout2d(0.1): identity in eval mode.


def fold_bn(gamma, beta, running_mean, running_var, eps=1e-5):
    scale = gamma / jnp.sqrt(running_var + eps)
    shift = beta - running_mean * scale
    return scale, shift


def _banded_conv_weights(w_oihw, scale, W, dtype):
    """Fold the BN scale (in f32) and build per-ky block-Toeplitz weight matrices.

    Returns (3, (W+2)*Cin, W*Cout) with
        Wband[ky, (x+kx)*Cin + ci, x*Cout + co] = scale[co] * w[co, ci, ky, kx]
    so that  out[y, x*Cout + co] = sum_ky  pad[y+ky, :] @ Wband[ky].
    """
    Cout, Cin = w_oihw.shape[0], w_oihw.shape[1]
    wf = w_oihw.astype(jnp.float32) * scale[:, None, None, None]     # fold in f32
    wk = jnp.transpose(wf, (2, 3, 1, 0))                             # (ky, kx, Cin, Cout)
    bands = []
    for ky in range(3):
        blk = wk[ky].reshape(3 * Cin, Cout)                          # rows ordered (kx, ci)
        band = jnp.zeros(((W + 2) * Cin, W * Cout), jnp.float32)
        for x in range(W):   # column blocks are disjoint across x -> plain .set is safe
            band = band.at[x * Cin:(x + 3) * Cin, x * Cout:(x + 1) * Cout].set(blk)
        bands.append(band)
    return jnp.stack(bands, axis=0).astype(dtype)                    # single cast to bf16


def double_conv_forward(x_nchw, params, *, matmul_dtype=jnp.bfloat16, out_dtype=None):
    """DoubleConv forward. Input/output are NCHW (PyTorch convention)."""
    N, Cin, H, W = x_nchw.shape
    Cmid = params["w1"].shape[0]
    Cout = params["w2"].shape[0]
    out_dtype = x_nchw.dtype if out_dtype is None else out_dtype

    # NCHW -> lane-dense (N, H, W*Cin); activations cast to bf16 for the MXU
    # (halves input HBM traffic).
    x = jnp.transpose(x_nchw, (0, 2, 3, 1)).reshape(N, H, W * Cin).astype(matmul_dtype)

    s1, sh1 = fold_bn(params["bn1_gamma"], params["bn1_beta"],
                      params["bn1_mean"], params["bn1_var"])
    s2, sh2 = fold_bn(params["bn2_gamma"], params["bn2_beta"],
                      params["bn2_mean"], params["bn2_var"])

    w1 = _banded_conv_weights(params["w1"], s1, W, matmul_dtype)  # (3,(W+2)Cin, W*Cmid)
    w2 = _banded_conv_weights(params["w2"], s2, W, matmul_dtype)  # (3,(W+2)Cmid,W*Cout)
    b1 = jnp.tile(sh1, W).reshape(1, W * Cmid).astype(jnp.float32)
    b2 = jnp.tile(sh2, W).reshape(1, W * Cout).astype(jnp.float32)

    kernel = functools.partial(_double_conv_kernel,
                               H=H, W=W, Cin=Cin, Cmid=Cmid, Cout=Cout)

    # Note: stores are fully unmasked only when W*Cmid / W*Cout are multiples of 128
    # (true at the test shape: 16*8 = 128); other shapes stay correct, just masked.
    bpe = lambda dt: jnp.dtype(dt).itemsize
    vmem_est = (2 * H * W * Cin * bpe(matmul_dtype)                     # input block x2
                + 2 * H * W * Cout * bpe(out_dtype)                     # output block x2
                + 2 * (3 * (W + 2) * Cin * W * Cmid
                       + 3 * (W + 2) * Cmid * W * Cout) * bpe(matmul_dtype)
                + 2 * W * (Cmid + Cout) * 4                             # shifts x2
                + (H + 2) * (W + 2) * (Cin + Cmid) * bpe(matmul_dtype))  # scratches
    vmem_limit = int(min(max(4 * vmem_est, 16 * 1024 * 1024), 64 * 1024 * 1024))

    out_flat = pl.pallas_call(
        kernel,
        out_shape=jax.ShapeDtypeStruct((N, H, W * Cout), out_dtype),
        grid_spec=pltpu.PrefetchScalarGridSpec(
            num_scalar_prefetch=0,
            grid=(N,),
            in_specs=[
                pl.BlockSpec((1, H, W * Cin), lambda n: (n, 0, 0)),
                pl.BlockSpec((3, (W + 2) * Cin, W * Cmid), lambda n: (0, 0, 0)),
                pl.BlockSpec((1, W * Cmid), lambda n: (0, 0)),
                pl.BlockSpec((3, (W + 2) * Cmid, W * Cout), lambda n: (0, 0, 0)),
                pl.BlockSpec((1, W * Cout), lambda n: (0, 0)),
            ],
            # Lane-dense output: last dim is W*Cout (128 at the test shape).
            out_specs=pl.BlockSpec((1, H, W * Cout), lambda n: (n, 0, 0)),
            scratch_shapes=[
                pltpu.VMEM((H + 2, (W + 2) * Cin), matmul_dtype),
                pltpu.VMEM((H + 2, (W + 2) * Cmid), matmul_dtype),
            ],
        ),
        compiler_params=pltpu.CompilerParams(
            dimension_semantics=("parallel",),
            vmem_limit_bytes=vmem_limit),
    )(x, w1, b1, w2, b2)

    out = out_flat.reshape(N, H, W, Cout)
    return jnp.transpose(out, (0, 3, 1, 2))   # lane-dense NHWC-flat -> NCHW


def reference_double_conv(x_nchw, params):
    """Pure-JAX f32 reference (lax.conv) for correctness check."""
    def block(x, w, gamma, beta, mean, var):
        y = lax.conv_general_dilated(
            x, w, window_strides=(1, 1), padding=((1, 1), (1, 1)),
            dimension_numbers=("NCHW", "OIHW", "NCHW"))
        scale = gamma / jnp.sqrt(var + 1e-5)
        shift = beta - mean * scale
        y = y * scale[None, :, None, None] + shift[None, :, None, None]
        return jnp.maximum(y, 0.0)

    y = block(x_nchw, params["w1"], params["bn1_gamma"], params["bn1_beta"],
              params["bn1_mean"], params["bn1_var"])
    y = block(y, params["w2"], params["bn2_gamma"], params["bn2_beta"],
              params["bn2_mean"], params["bn2_var"])
    return y


def make_params(key, in_channels, mid_channels, out_channels):
    ks = jax.random.split(key, 8)
    return {
        "w1": jax.random.normal(ks[0], (mid_channels, in_channels, 3, 3), jnp.float32) * 0.1,
        "w2": jax.random.normal(ks[1], (out_channels, mid_channels, 3, 3), jnp.float32) * 0.1,
        "bn1_gamma": 1.0 + 0.1 * jax.random.normal(ks[2], (mid_channels,), jnp.float32),
        "bn1_beta": 0.1 * jax.random.normal(ks[3], (mid_channels,), jnp.float32),
        "bn1_mean": 0.05 * jax.random.normal(ks[4], (mid_channels,), jnp.float32),
        "bn1_var": jnp.abs(1.0 + 0.1 * jax.random.normal(ks[5], (mid_channels,), jnp.float32)),
        "bn2_gamma": 1.0 + 0.1 * jax.random.normal(ks[6], (out_channels,), jnp.float32),
        "bn2_beta": 0.1 * jax.random.normal(ks[7], (out_channels,), jnp.float32),
        "bn2_mean": jnp.zeros((out_channels,), jnp.float32),
        "bn2_var": jnp.ones((out_channels,), jnp.float32),
    }


if __name__ == "__main__":
    N, Cin, H, W = 2, 4, 16, 16
    Cmid, Cout = 8, 8

    key = jax.random.PRNGKey(0)
    kx, kp = jax.random.split(key)
    x = jax.random.normal(kx, (N, Cin, H, W), jnp.float32)   # NCHW, like PyTorch
    params = make_params(kp, Cin, Cmid, Cout)

    out = jax.block_until_ready(double_conv_forward(x, params))
    ref = jax.block_until_ready(reference_double_conv(x, params))

    assert out.shape == (N, Cout, H, W), out.shape
    # bf16 matmul operands vs. f32 reference -> loosened tolerance.
    assert jnp.allclose(out, ref, atol=5e-2, rtol=5e-2), \
        f"mismatch vs reference: max |diff| = {float(jnp.max(jnp.abs(out - ref)))}"

    print("KERNEL_OK")
</pallas_src>

<mosaic_0001>
module attributes {stable_mosaic.version = 11 : i64} {
  func.func @_double_conv_kernel(%arg0: i32, %arg1: memref<1x16x64xbf16, #tpu.memory_space<vmem>>, %arg2: memref<3x72x128xbf16, #tpu.memory_space<vmem>>, %arg3: memref<1x128xf32, #tpu.memory_space<vmem>>, %arg4: memref<3x144x128xbf16, #tpu.memory_space<vmem>>, %arg5: memref<1x128xf32, #tpu.memory_space<vmem>>, %arg6: memref<1x16x128xf32, #tpu.memory_space<vmem>>, %arg7: memref<18x72xbf16, #tpu.memory_space<vmem>>, %arg8: memref<18x144xbf16, #tpu.memory_space<vmem>>) attributes {dimension_semantics = [#tpu.dimension_semantics<parallel>], iteration_bounds = array<i64: 2>, scalar_prefetch = 0 : i64, scratch_operands = 2 : i64, tpu.core_type = #tpu.core_type<tc>, window_params = [{transform_indices = @transform_0, window_bounds = array<i64: 1, 16, 64>}, {pipeline_mode = #tpu.pipeline_mode<synchronous>, transform_indices = @transform_1, window_bounds = array<i64: 3, 72, 128>}, {pipeline_mode = #tpu.pipeline_mode<synchronous>, transform_indices = @transform_2, window_bounds = array<i64: 1, 128>}, {pipeline_mode = #tpu.pipeline_mode<synchronous>, transform_indices = @transform_3, window_bounds = array<i64: 3, 144, 128>}, {pipeline_mode = #tpu.pipeline_mode<synchronous>, transform_indices = @transform_4, window_bounds = array<i64: 1, 128>}, {transform_indices = @transform_5, window_bounds = array<i64: 1, 16, 128>}]} {
    %cst = arith.constant 0.000000e+00 : bf16
    %0 = vector.broadcast %cst : bf16 to vector<1x72xbf16>
    %c0 = arith.constant 0 : index
    %c0_0 = arith.constant 0 : index
    %1 = vector.load %arg7[%c0, %c0_0] : memref<18x72xbf16, #tpu.memory_space<vmem>>, vector<1x72xbf16>
    tpu.vector_store %arg7[%c0, %c0_0], %0 {strides = array<i32>} : memref<18x72xbf16, #tpu.memory_space<vmem>>, vector<1x72xbf16>,
    %c17 = arith.constant 17 : index
    %c0_1 = arith.constant 0 : index
    %2 = vector.load %arg7[%c17, %c0_1] : memref<18x72xbf16, #tpu.memory_space<vmem>>, vector<1x72xbf16>
    tpu.vector_store %arg7[%c17, %c0_1], %0 {strides = array<i32>} : memref<18x72xbf16, #tpu.memory_space<vmem>>, vector<1x72xbf16>,
    %cst_2 = arith.constant 0.000000e+00 : bf16
    %3 = vector.broadcast %cst_2 : bf16 to vector<16x4xbf16>
    %c1 = arith.constant 1 : index
    %c0_3 = arith.constant 0 : index
    %4 = vector.load %arg7[%c1, %c0_3] : memref<18x72xbf16, #tpu.memory_space<vmem>>, vector<16x4xbf16>
    tpu.vector_store %arg7[%c1, %c0_3], %3 {strides = array<i32>} : memref<18x72xbf16, #tpu.memory_space<vmem>>, vector<16x4xbf16>,
    %c1_4 = arith.constant 1 : index
    %c68 = arith.constant 68 : index
    %5 = vector.load %arg7[%c1_4, %c68] : memref<18x72xbf16, #tpu.memory_space<vmem>>, vector<16x4xbf16>
    tpu.vector_store %arg7[%c1_4, %c68], %3 {strides = array<i32>} : memref<18x72xbf16, #tpu.memory_space<vmem>>, vector<16x4xbf16>,
    %cst_5 = arith.constant 0.000000e+00 : bf16
    %6 = vector.broadcast %cst_5 : bf16 to vector<1x144xbf16>
    %c0_6 = arith.constant 0 : index
    %c0_7 = arith.constant 0 : index
    %7 = vector.load %arg8[%c0_6, %c0_7] : memref<18x144xbf16, #tpu.memory_space<vmem>>, vector<1x144xbf16>
    tpu.vector_store %arg8[%c0_6, %c0_7], %6 {strides = array<i32>} : memref<18x144xbf16, #tpu.memory_space<vmem>>, vector<1x144xbf16>,
    %c17_8 = arith.constant 17 : index
    %c0_9 = arith.constant 0 : index
    %8 = vector.load %arg8[%c17_8, %c0_9] : memref<18x144xbf16, #tpu.memory_space<vmem>>, vector<1x144xbf16>
    tpu.vector_store %arg8[%c17_8, %c0_9], %6 {strides = array<i32>} : memref<18x144xbf16, #tpu.memory_space<vmem>>, vector<1x144xbf16>,
    %cst_10 = arith.constant 0.000000e+00 : bf16
    %9 = vector.broadcast %cst_10 : bf16 to vector<16x8xbf16>
    %c1_11 = arith.constant 1 : index
    %c0_12 = arith.constant 0 : index
    %10 = vector.load %arg8[%c1_11, %c0_12] : memref<18x144xbf16, #tpu.memory_space<vmem>>, vector<16x8xbf16>
    tpu.vector_store %arg8[%c1_11, %c0_12], %9 {strides = array<i32>} : memref<18x144xbf16, #tpu.memory_space<vmem>>, vector<16x8xbf16>,
    %c1_13 = arith.constant 1 : index
    %c136 = arith.constant 136 : index
    %11 = vector.load %arg8[%c1_13, %c136] : memref<18x144xbf16, #tpu.memory_space<vmem>>, vector<16x8xbf16>
    tpu.vector_store %arg8[%c1_13, %c136], %9 {strides = array<i32>} : memref<18x144xbf16, #tpu.memory_space<vmem>>, vector<16x8xbf16>,
    %c0_14 = arith.constant 0 : index
    %c0_15 = arith.constant 0 : index
    %c0_16 = arith.constant 0 : index
    %12 = vector.load %arg1[%c0_14, %c0_15, %c0_16] : memref<1x16x64xbf16, #tpu.memory_space<vmem>>, vector<1x16x64xbf16>
    %13 = vector.shape_cast %12 : vector<1x16x64xbf16> to vector<16x64xbf16>
    %c1_17 = arith.constant 1 : index
    %c4 = arith.constant 4 : index
    %14 = vector.load %arg7[%c1_17, %c4] : memref<18x72xbf16, #tpu.memory_space<vmem>>, vector<16x64xbf16>
    tpu.vector_store %arg7[%c1_17, %c4], %13 {strides = array<i32>} : memref<18x72xbf16, #tpu.memory_space<vmem>>, vector<16x64xbf16>,
    %c0_18 = arith.constant 0 : index
    %c0_19 = arith.constant 0 : index
    %15 = vector.load %arg7[%c0_18, %c0_19] : memref<18x72xbf16, #tpu.memory_space<vmem>>, vector<16x72xbf16>
    %c0_20 = arith.constant 0 : index
    %c0_21 = arith.constant 0 : index
    %c0_22 = arith.constant 0 : index
    %16 = vector.load %arg2[%c0_20, %c0_21, %c0_22] : memref<3x72x128xbf16, #tpu.memory_space<vmem>>, vector<1x72x128xbf16>
    %17 = vector.shape_cast %16 : vector<1x72x128xbf16> to vector<72x128xbf16>
    %cst_23 = arith.constant dense<0.000000e+00> : vector<16x128xf32>
    %18 = tpu.matmul %15, %17, %cst_23 {dimension_numbers = #tpu.dot_dimension_numbers<[1], [0], [0], [1], [0, 0, 1, 1], [], []>} : vector<16x72xbf16>, vector<72x128xbf16>, vector<16x128xf32> -> vector<16x128xf32>
    %c1_24 = arith.constant 1 : index
    %c0_25 = arith.constant 0 : index
    %19 = vector.load %arg7[%c1_24, %c0_25] : memref<18x72xbf16, #tpu.memory_space<vmem>>, vector<16x72xbf16>
    %c1_26 = arith.constant 1 : index
    %c0_27 = arith.constant 0 : index
    %c0_28 = arith.constant 0 : index
    %20 = vector.load %arg2[%c1_26, %c0_27, %c0_28] : memref<3x72x128xbf16, #tpu.memory_space<vmem>>, vector<1x72x128xbf16>
    %21 = vector.shape_cast %20 : vector<1x72x128xbf16> to vector<72x128xbf16>
    %cst_29 = arith.constant dense<0.000000e+00> : vector<16x128xf32>
    %22 = tpu.matmul %19, %21, %cst_29 {dimension_numbers = #tpu.dot_dimension_numbers<[1], [0], [0], [1], [0, 0, 1, 1], [], []>} : vector<16x72xbf16>, vector<72x128xbf16>, vector<16x128xf32> -> vector<16x128xf32>
    %23 = arith.addf %18, %22 : vector<16x128xf32>
    %c2 = arith.constant 2 : index
    %c0_30 = arith.constant 0 : index
    %24 = vector.load %arg7[%c2, %c0_30] : memref<18x72xbf16, #tpu.memory_space<vmem>>, vector<16x72xbf16>
    %c2_31 = arith.constant 2 : index
    %c0_32 = arith.constant 0 : index
    %c0_33 = arith.constant 0 : index
    %25 = vector.load %arg2[%c2_31, %c0_32, %c0_33] : memref<3x72x128xbf16, #tpu.memory_space<vmem>>, vector<1x72x128xbf16>
    %26 = vector.shape_cast %25 : vector<1x72x128xbf16> to vector<72x128xbf16>
    %cst_34 = arith.constant dense<0.000000e+00> : vector<16x128xf32>
    %27 = tpu.matmul %24, %26, %cst_34 {dimension_numbers = #tpu.dot_dimension_numbers<[1], [0], [0], [1], [0, 0, 1, 1], [], []>} : vector<16x72xbf16>, vector<72x128xbf16>, vector<16x128xf32> -> vector<16x128xf32>
    %28 = arith.addf %23, %27 : vector<16x128xf32>
    %c0_35 = arith.constant 0 : index
    %c0_36 = arith.constant 0 : index
    %29 = vector.load %arg3[%c0_35, %c0_36] : memref<1x128xf32, #tpu.memory_space<vmem>>, vector<1x128xf32>
    %30 = vector.broadcast %29 : vector<1x128xf32> to vector<16x128xf32>
    %31 = arith.addf %28, %30 : vector<16x128xf32>
    %cst_37 = arith.constant 0.000000e+00 : f32
    %32 = vector.broadcast %cst_37 : f32 to vector<16x128xf32>
    %33 = arith.maximumf %31, %32 : vector<16x128xf32>
    %34 = arith.truncf %33 : vector<16x128xf32> to vector<16x128xbf16>
    %c1_38 = arith.constant 1 : index
    %c8 = arith.constant 8 : index
    %35 = vector.load %arg8[%c1_38, %c8] : memref<18x144xbf16, #tpu.memory_space<vmem>>, vector<16x128xbf16>
    tpu.vector_store %arg8[%c1_38, %c8], %34 {strides = array<i32>} : memref<18x144xbf16, #tpu.memory_space<vmem>>, vector<16x128xbf16>,
    %c0_39 = arith.constant 0 : index
    %c0_40 = arith.constant 0 : index
    %36 = vector.load %arg8[%c0_39, %c0_40] : memref<18x144xbf16, #tpu.memory_space<vmem>>, vector<16x144xbf16>
    %c0_41 = arith.constant 0 : index
    %c0_42 = arith.constant 0 : index
    %c0_43 = arith.constant 0 : index
    %37 = vector.load %arg4[%c0_41, %c0_42, %c0_43] : memref<3x144x128xbf16, #tpu.memory_space<vmem>>, vector<1x144x128xbf16>
    %38 = vector.shape_cast %37 : vector<1x144x128xbf16> to vector<144x128xbf16>
    %cst_44 = arith.constant dense<0.000000e+00> : vector<16x128xf32>
    %39 = tpu.matmul %36, %38, %cst_44 {dimension_numbers = #tpu.dot_dimension_numbers<[1], [0], [0], [1], [0, 0, 1, 1], [], []>} : vector<16x144xbf16>, vector<144x128xbf16>, vector<16x128xf32> -> vector<16x128xf32>
    %c1_45 = arith.constant 1 : index
    %c0_46 = arith.constant 0 : index
    %40 = vector.load %arg8[%c1_45, %c0_46] : memref<18x144xbf16, #tpu.memory_space<vmem>>, vector<16x144xbf16>
    %c1_47 = arith.constant 1 : index
    %c0_48 = arith.constant 0 : index
    %c0_49 = arith.constant 0 : index
    %41 = vector.load %arg4[%c1_47, %c0_48, %c0_49] : memref<3x144x128xbf16, #tpu.memory_space<vmem>>, vector<1x144x128xbf16>
    %42 = vector.shape_cast %41 : vector<1x144x128xbf16> to vector<144x128xbf16>
    %cst_50 = arith.constant dense<0.000000e+00> : vector<16x128xf32>
    %43 = tpu.matmul %40, %42, %cst_50 {dimension_numbers = #tpu.dot_dimension_numbers<[1], [0], [0], [1], [0, 0, 1, 1], [], []>} : vector<16x144xbf16>, vector<144x128xbf16>, vector<16x128xf32> -> vector<16x128xf32>
    %44 = arith.addf %39, %43 : vector<16x128xf32>
    %c2_51 = arith.constant 2 : index
    %c0_52 = arith.constant 0 : index
    %45 = vector.load %arg8[%c2_51, %c0_52] : memref<18x144xbf16, #tpu.memory_space<vmem>>, vector<16x144xbf16>
    %c2_53 = arith.constant 2 : index
    %c0_54 = arith.constant 0 : index
    %c0_55 = arith.constant 0 : index
    %46 = vector.load %arg4[%c2_53, %c0_54, %c0_55] : memref<3x144x128xbf16, #tpu.memory_space<vmem>>, vector<1x144x128xbf16>
    %47 = vector.shape_cast %46 : vector<1x144x128xbf16> to vector<144x128xbf16>
    %cst_56 = arith.constant dense<0.000000e+00> : vector<16x128xf32>
    %48 = tpu.matmul %45, %47, %cst_56 {dimension_numbers = #tpu.dot_dimension_numbers<[1], [0], [0], [1], [0, 0, 1, 1], [], []>} : vector<16x144xbf16>, vector<144x128xbf16>, vector<16x128xf32> -> vector<16x128xf32>
    %49 = arith.addf %44, %48 : vector<16x128xf32>
    %c0_57 = arith.constant 0 : index
    %c0_58 = arith.constant 0 : index
    %50 = vector.load %arg5[%c0_57, %c0_58] : memref<1x128xf32, #tpu.memory_space<vmem>>, vector<1x128xf32>
    %51 = vector.broadcast %50 : vector<1x128xf32> to vector<16x128xf32>
    %52 = arith.addf %49, %51 : vector<16x128xf32>
    %cst_59 = arith.constant 0.000000e+00 : f32
    %53 = vector.broadcast %cst_59 : f32 to vector<16x128xf32>
    %54 = arith.maximumf %52, %53 : vector<16x128xf32>
    %55 = vector.shape_cast %54 : vector<16x128xf32> to vector<1x16x128xf32>
    %c0_60 = arith.constant 0 : index
    %c0_61 = arith.constant 0 : index
    %c0_62 = arith.constant 0 : index
    %56 = vector.load %arg6[%c0_60, %c0_61, %c0_62] : memref<1x16x128xf32, #tpu.memory_space<vmem>>, vector<1x16x128xf32>
    tpu.vector_store %arg6[%c0_60, %c0_61, %c0_62], %55 {strides = array<i32>} : memref<1x16x128xf32, #tpu.memory_space<vmem>>, vector<1x16x128xf32>,
    return
  }
  func.func @transform_0(%arg0: i32) -> (i32, i32, i32) {
    %c0_i32 = arith.constant 0 : i32
    %c0_i32_0 = arith.constant 0 : i32
    %c0_i32_1 = arith.constant 0 : i32
    return %arg0, %c0_i32, %c0_i32_0 : i32, i32, i32
  }
  func.func @transform_1(%arg0: i32) -> (i32, i32, i32) {
    %c0_i32 = arith.constant 0 : i32
    %c0_i32_0 = arith.constant 0 : i32
    %c0_i32_1 = arith.constant 0 : i32
    %c0_i32_2 = arith.constant 0 : i32
    return %c0_i32, %c0_i32_0, %c0_i32_1 : i32, i32, i32
  }
  func.func @transform_2(%arg0: i32) -> (i32, i32) {
    %c0_i32 = arith.constant 0 : i32
    %c0_i32_0 = arith.constant 0 : i32
    %c0_i32_1 = arith.constant 0 : i32
    return %c0_i32, %c0_i32_0 : i32, i32
  }
  func.func @transform_3(%arg0: i32) -> (i32, i32, i32) {
    %c0_i32 = arith.constant 0 : i32
    %c0_i32_0 = arith.constant 0 : i32
    %c0_i32_1 = arith.constant 0 : i32
    %c0_i32_2 = arith.constant 0 : i32
    return %c0_i32, %c0_i32_0, %c0_i32_1 : i32, i32, i32
  }
  func.func @transform_4(%arg0: i32) -> (i32, i32) {
    %c0_i32 = arith.constant 0 : i32
    %c0_i32_0 = arith.constant 0 : i32
    %c0_i32_1 = arith.constant 0 : i32
    return %c0_i32, %c0_i32_0 : i32, i32
  }
  func.func @transform_5(%arg0: i32) -> (i32, i32, i32) {
    %c0_i32 = arith.constant 0 : i32
    %c0_i32_0 = arith.constant 0 : i32
    %c0_i32_1 = arith.constant 0 : i32
    return %arg0, %c0_i32, %c0_i32_0 : i32, i32, i32
  }
}

</mosaic_0001>

<llo_original>
// kernel: tpu_custom_call.1
$region0: #{tpu_custom_call.1}
  #allocation0 [shape = 'u32[]', space=smem, size = 0x4, offset = 0x4, fixed_abs, tag = 'smem constant byte address 0x4 - core index']
  #allocation1 [shape = 'u32[72,128]{1,0:T(1,128)}', space=vmem, size = 0x9000, scoped, tag = 'internal scratch']
  #allocation2 [shape = 'bf16[18,72]{1,0:T(8,128)(2,1)}', space=vmem, size = 0x1800, scoped, tag = 'scratch operand']
  #allocation3 [shape = 'bf16[18,144]{1,0:T(8,128)(2,1)}', space=vmem, size = 0x3000, scoped, tag = 'scratch operand']
  %s0 = inlined_call_operand.hbm [shape: bf16[2,16,64], index: 0, kind: input, shape index: {}]
  %s1 = inlined_call_operand.hbm [shape: bf16[3,72,128], index: 1, kind: input, shape index: {}]
  %s2 = inlined_call_operand.vmem [shape: f32[1,128], index: 2, kind: input, shape index: {}]
  %s3 = inlined_call_operand.hbm [shape: bf16[3,144,128], index: 3, kind: input, shape index: {}]
  %s4 = inlined_call_operand.vmem [shape: f32[1,128], index: 4, kind: input, shape index: {}]
  %s5 = inlined_call_operand.hbm [shape: f32[2,16,128], index: 5, kind: output, shape index: {}]
  %s6 = sld [smem:[#allocation0]]
  $region65: #{tpu_custom_call.1} parent=0
    _
  %s8 = ssub.s32 1, %s6
  %s9 = scalar_select 0, %s8, %s6
  $region1: #{tpu_custom_call.1} parent=0
    #allocation4 [shape = 'u8[8192]{0}', space=vmem, size = 0x2000, scoped, tag = 'input window, operand 0']
    #allocation5 [shape = 's32[2]{0}', space=sflag, size = 0x8, scoped, tag = 'scoped memory for tpu_custom_call.1']
    #allocation6 [shape = 's32[2]{0}', space=sflag, size = 0x8, scoped, tag = 'scoped memory for tpu_custom_call.1']
    #allocation7 [shape = 'u8[55296]{0}', space=vmem, size = 0xd800, scoped, tag = 'input window, operand 1, single buffered']
    #allocation8 [shape = 's32[1]{0}', space=sflag, size = 0x4, scoped, tag = 'scoped memory for tpu_custom_call.1']
    #allocation9 [shape = 'u8[110592]{0}', space=vmem, size = 0x1b000, scoped, tag = 'input window, operand 3, single buffered']
    #allocation10 [shape = 'u8[16384]{0}', space=vmem, size = 0x4000, scoped, tag = 'output window, operand 0']
    %10 = vsyncpa [#allocation5], 0
    %s11 = scalar_lea.sflag [#allocation5], 1
    %12 = vsyncpa %s11, 0
    %13 = vsyncpa [#allocation8], 0
    %14 = vsyncpa [#allocation6], 0
    %s15 = scalar_lea.sflag [#allocation6], 1
    %16 = vsyncpa %s15, 0
    loop: start=0, step=1, limit=4
    $region2: #{tpu_custom_call.1} parent=1 // loop_pre_header
      _
    $region3: #{tpu_custom_call.1} parent=1 // loop_header
      %s18 = sphi 0, %s22
      %p19 = scmp.ge.s32.totalorder %s18, 4
      %s28 = sphi 0, %s30
      %s31 = sphi 0, %s28
      %s32 = sphi 0, %s31
      %s48 = sphi 0, %s32
      %s52 = sphi 0, %s52
      %s54 = sphi 0, %s52
      %s55 = sphi 0, %s54
      %s69 = sphi 0, %s55
      %s73 = sphi 0, %s73
      %s75 = sphi 0, %s73
      %s76 = sphi 0, %s75
      %s90 = sphi 0, %s76
      %s94 = sphi 0, %s94
      %s96 = sphi 0, %s94
      %s97 = sphi 0, %s96
      %s111 = sphi 0, %s97
      %s115 = sphi 0, %s115
      %s117 = sphi 0, %s115
      %s118 = sphi 0, %s117
      %s132 = sphi 0, %s118
      %s138 = sphi 0, %s140
      %s141 = sphi 0, %s138
      %s142 = sphi 0, %s141
      %s158 = sphi 0, %s142
    $region4: #{tpu_custom_call.1} parent=1 // loop_header_branch
      %21 = sbr.rel (%p19) target = $region8
    $region5: #{tpu_custom_call.1} parent=1 // loop_body
      %s23 = ssub.s32 %s18, 1
      %s24 = ssub.s32 %s18, 2
      %s25 = sadd.s32 %s18, 1
      %s26 = ssub.s32 %s18, %s25
      %p27 = scmp.eq.s32.totalorder %s26, 0
      %s29 = sadd.s32 %s28, 1
      %s30 = scalar_select %p27, %s28, %s29
      %p33 = pneg %p27
      %p34 = scmp.eq.s32.totalorder %s18, 1
      %p35 = por %p33, %p34
      %p36 = scmp.ne.s32.totalorder %s28, %s31
      %p37 = scmp.eq.s32.totalorder %s18, 0
      %p38 = por %p36, %p37
      %p39 = scmp.ne.s32.totalorder %s28, %s31
      %p40 = scmp.eq.s32.totalorder %s23, 1
      %p41 = por %p39, %p40
      %p42 = scmp.ne.s32.totalorder %s31, %s32
      %p43 = scmp.eq.s32.totalorder %s23, 0
      %p44 = por %p42, %p43
      %p45 = scmp.ne.s32.totalorder %s31, %s32
      %p46 = scmp.eq.s32.totalorder %s24, 1
      %p47 = por %p45, %p46
      %p49 = scmp.ne.s32.totalorder %s32, %s48
      %p50 = scmp.eq.s32.totalorder %s24, 0
      %p51 = por %p49, %p50
      %s53 = sadd.s32 %s52, 1
      %p56 = scmp.eq.s32.totalorder %s18, 1
      %p57 = scmp.ne.s32.totalorder %s52, %s54
      %p58 = scmp.eq.s32.totalorder %s18, 0
      %p59 = por %p57, %p58
      %p60 = scmp.ne.s32.totalorder %s52, %s54
      %p61 = scmp.eq.s32.totalorder %s23, 1
      %p62 = por %p60, %p61
      %p63 = scmp.ne.s32.totalorder %s54, %s55
      %p64 = scmp.eq.s32.totalorder %s23, 0
      %p65 = por %p63, %p64
      %p66 = scmp.ne.s32.totalorder %s54, %s55
      %p67 = scmp.eq.s32.totalorder %s24, 1
      %p68 = por %p66, %p67
      %p70 = scmp.ne.s32.totalorder %s55, %s69
      %p71 = scmp.eq.s32.totalorder %s24, 0
      %p72 = por %p70, %p71
      %s74 = sadd.s32 %s73, 1
      %p77 = scmp.eq.s32.totalorder %s18, 1
      %p78 = scmp.ne.s32.totalorder %s73, %s75
      %p79 = scmp.eq.s32.totalorder %s18, 0
      %p80 = por %p78, %p79
      %p81 = scmp.ne.s32.totalorder %s73, %s75
      %p82 = scmp.eq.s32.totalorder %s23, 1
      %p83 = por %p81, %p82
      %p84 = scmp.ne.s32.totalorder %s75, %s76
      %p85 = scmp.eq.s32.totalorder %s23, 0
      %p86 = por %p84, %p85
      %p87 = scmp.ne.s32.totalorder %s75, %s76
      %p88 = scmp.eq.s32.totalorder %s24, 1
      %p89 = por %p87, %p88
      %p91 = scmp.ne.s32.totalorder %s76, %s90
      %p92 = scmp.eq.s32.totalorder %s24, 0
      %p93 = por %p91, %p92
      %s95 = sadd.s32 %s94, 1
      %p98 = scmp.eq.s32.totalorder %s18, 1
      %p99 = scmp.ne.s32.totalorder %s94, %s96
      %p100 = scmp.eq.s32.totalorder %s18, 0
      %p101 = por %p99, %p100
      %p102 = scmp.ne.s32.totalorder %s94, %s96
      %p103 = scmp.eq.s32.totalorder %s23, 1
      %p104 = por %p102, %p103
      %p105 = scmp.ne.s32.totalorder %s96, %s97
      %p106 = scmp.eq.s32.totalorder %s23, 0
      %p107 = por %p105, %p106
      %p108 = scmp.ne.s32.totalorder %s96, %s97
      %p109 = scmp.eq.s32.totalorder %s24, 1
      %p110 = por %p108, %p109
      %p112 = scmp.ne.s32.totalorder %s97, %s111
      %p113 = scmp.eq.s32.totalorder %s24, 0
      %p114 = por %p112, %p113
      %s116 = sadd.s32 %s115, 1
      %p119 = scmp.eq.s32.totalorder %s18, 1
      %p120 = scmp.ne.s32.totalorder %s115, %s117
      %p121 = scmp.eq.s32.totalorder %s18, 0
      %p122 = por %p120, %p121
      %p123 = scmp.ne.s32.totalorder %s115, %s117
      %p124 = scmp.eq.s32.totalorder %s23, 1
      %p125 = por %p123, %p124
      %p126 = scmp.ne.s32.totalorder %s117, %s118
      %p127 = scmp.eq.s32.totalorder %s23, 0
      %p128 = por %p126, %p127
      %p129 = scmp.ne.s32.totalorder %s117, %s118
      %p130 = scmp.eq.s32.totalorder %s24, 1
      %p131 = por %p129, %p130
      %p133 = scmp.ne.s32.totalorder %s118, %s132
      %p134 = scmp.eq.s32.totalorder %s24, 0
      %p135 = por %p133, %p134
      %s136 = ssub.s32 %s18, %s25
      %p137 = scmp.eq.s32.totalorder %s136, 0
      %s139 = sadd.s32 %s138, 1
      %s140 = scalar_select %p137, %s138, %s139
      %p143 = pneg %p137
      %p144 = scmp.eq.s32.totalorder %s18, 1
      %p145 = por %p143, %p144
      %p146 = scmp.ne.s32.totalorder %s138, %s141
      %p147 = scmp.eq.s32.totalorder %s18, 0
      %p148 = por %p146, %p147
      %p149 = scmp.ne.s32.totalorder %s138, %s141
      %p150 = scmp.eq.s32.totalorder %s23, 1
      %p151 = por %p149, %p150
      %p152 = scmp.ne.s32.totalorder %s141, %s142
      %p153 = scmp.eq.s32.totalorder %s23, 0
      %p154 = por %p152, %p153
      %p155 = scmp.ne.s32.totalorder %s141, %s142
      %p156 = scmp.eq.s32.totalorder %s24, 1
      %p157 = por %p155, %p156
      %p159 = scmp.ne.s32.totalorder %s142, %s158
      %p160 = scmp.eq.s32.totalorder %s24, 0
      %p161 = por %p159, %p160
      %p162 = scmp.le.s32.totalorder 1, %s18
      %p163 = scmp.lt.s32.totalorder %s18, 3
      %p164 = pnand %p162, %p163
      %p165 = pneg %p164
      // Predicated region
      $region9: #{tpu_custom_call.1} parent=5 // pred_check
        _
      $region10: #{tpu_custom_call.1} parent=5 // pred_check_branch
        %167 = sbr.rel (%p164) target = $region12
      $region11: #{tpu_custom_call.1} parent=5 // pred_region
        %s168 = ssub.s32 %s18, 1
        // Predicated region
        $region13: #{tpu_custom_call.1} parent=11 // pred_check
          %p169 = pneg %p65
        $region14: #{tpu_custom_call.1} parent=11 // pred_check_branch
          %171 = sbr.rel (%p169) target = $region16
        $region15: #{tpu_custom_call.1} parent=11 // pred_region
          %173 = vsyncadd [#allocation8], 0
          %s174 = sshll.u32 %s1, 4
          %s175 = int_to_ptr.hbm [resolvable:$true] %s174
          %s176 = sshll.u32 [#allocation7], 4
          %s177 = int_to_ptr.vmem [resolvable:$true] %s176
          %182 = dma.hbm_to_vmem [thread:$0]  %s175, 1728, %s177, [#allocation8], 64, 64, 4
        $region16: #{tpu_custom_call.1} parent=11 // pred_fallthru
          _
        // Predicated region
        $region17: #{tpu_custom_call.1} parent=11 // pred_check
          %p183 = pneg %p86
        $region18: #{tpu_custom_call.1} parent=11 // pred_check_branch
          %185 = sbr.rel (%p183) target = $region20
        $region19: #{tpu_custom_call.1} parent=11 // pred_region
          _
        $region20: #{tpu_custom_call.1} parent=11 // pred_fallthru
          _
        // Predicated region
        $region21: #{tpu_custom_call.1} parent=11 // pred_check
          %p186 = pneg %p107
        $region22: #{tpu_custom_call.1} parent=11 // pred_check_branch
          %188 = sbr.rel (%p186) target = $region24
        $region23: #{tpu_custom_call.1} parent=11 // pred_region
          %190 = vsyncadd [#allocation8], 0
          %s191 = sshll.u32 %s3, 4
          %s192 = int_to_ptr.hbm [resolvable:$true] %s191
          %s193 = sshll.u32 [#allocation9], 4
          %s194 = int_to_ptr.vmem [resolvable:$true] %s193
          %199 = dma.hbm_to_vmem [thread:$0]  %s192, 3456, %s194, [#allocation8], 64, 64, 4
        $region24: #{tpu_custom_call.1} parent=11 // pred_fallthru
          _
        // Predicated region
        $region25: #{tpu_custom_call.1} parent=11 // pred_check
          %p200 = pneg %p128
        $region26: #{tpu_custom_call.1} parent=11 // pred_check_branch
          %202 = sbr.rel (%p200) target = $region28
        $region27: #{tpu_custom_call.1} parent=11 // pred_region
          _
        $region28: #{tpu_custom_call.1} parent=11 // pred_fallthru
          _
      $region12: #{tpu_custom_call.1} parent=5 // pred_fallthru
        _
      %p203 = scmp.lt.s32.totalorder %s18, 2
      // Predicated region
      $region29: #{tpu_custom_call.1} parent=5 // pred_check
        %p204 = pneg %p203
      $region30: #{tpu_custom_call.1} parent=5 // pred_check_branch
        %206 = sbr.rel (%p204) target = $region32
      $region31: #{tpu_custom_call.1} parent=5 // pred_region
        // Predicated region
        $region33: #{tpu_custom_call.1} parent=31 // pred_check
          %p207 = pneg %p38
        $region34: #{tpu_custom_call.1} parent=31 // pred_check_branch
          %209 = sbr.rel (%p207) target = $region36
        $region35: #{tpu_custom_call.1} parent=31 // pred_region
          %s210 = sand.u32 %s28, 1
          %s211 = scalar_lea.sflag [#allocation5], %s210
          %s212 = sand.u32 %s28, 1
          %s213 = smul.addr %s212, 8
          %s214 = scalar_lea.vmem [#allocation4], %s213
          %216 = vsyncadd %s211, 0
          %s217 = smul.addr %s18, 2
          %s218 = smul.addr %s217, 4
          %s219 = scalar_lea.hbm %s0, %s218
          %s220 = sshll.u32 %s219, 4
          %s221 = int_to_ptr.hbm [resolvable:$true] %s220
          %s222 = sshll.u32 %s214, 4
          %s223 = int_to_ptr.vmem [resolvable:$true] %s222
          %228 = dma.hbm_to_vmem [thread:$0]  %s221, 128, %s223, %s211, 64, 64, 4
        $region36: #{tpu_custom_call.1} parent=31 // pred_fallthru
          _
      $region32: #{tpu_custom_call.1} parent=5 // pred_fallthru
        _
      %p229 = scmp.le.s32.totalorder 1, %s18
      %p230 = scmp.lt.s32.totalorder %s18, 3
      %p231 = pnand %p229, %p230
      %p232 = pneg %p231
      // Predicated region
      $region37: #{tpu_custom_call.1} parent=5 // pred_check
        _
      $region38: #{tpu_custom_call.1} parent=5 // pred_check_branch
        %234 = sbr.rel (%p231) target = $region40
      $region39: #{tpu_custom_call.1} parent=5 // pred_region
        %s235 = ssub.s32 %s18, 1
        %s236 = sand.u32 %s31, 1
        %s237 = scalar_lea.sflag [#allocation5], %s236
        %s238 = sand.u32 %s31, 1
        %s239 = smul.addr %s238, 8
        %s240 = scalar_lea.vmem [#allocation4], %s239
        // Predicated region
        $region41: #{tpu_custom_call.1} parent=39 // pred_check
          %p241 = pneg %p44
        $region42: #{tpu_custom_call.1} parent=39 // pred_check_branch
          %243 = sbr.rel (%p241) target = $region44
        $region43: #{tpu_custom_call.1} parent=39 // pred_region
          %245 = dma.done %s237, 128
        $region44: #{tpu_custom_call.1} parent=39 // pred_fallthru
          _
        // Predicated region
        $region45: #{tpu_custom_call.1} parent=39 // pred_check
          %p246 = pneg %p65
        $region46: #{tpu_custom_call.1} parent=39 // pred_check_branch
          %248 = sbr.rel (%p246) target = $region48
        $region47: #{tpu_custom_call.1} parent=39 // pred_region
          %250 = dma.done [#allocation8], 1728
        $region48: #{tpu_custom_call.1} parent=39 // pred_fallthru
          _
        // Predicated region
        $region49: #{tpu_custom_call.1} parent=39 // pred_check
          %p251 = pneg %p107
        $region50: #{tpu_custom_call.1} parent=39 // pred_check_branch
          %253 = sbr.rel (%p251) target = $region52
        $region51: #{tpu_custom_call.1} parent=39 // pred_region
          %255 = dma.done [#allocation8], 3456
        $region52: #{tpu_custom_call.1} parent=39 // pred_fallthru
          _
        %s256 = sand.u32 %s31, 1
        %s257 = scalar_lea.sflag [#allocation5], %s256
        %s258 = sand.u32 %s31, 1
        %s259 = smul.addr %s258, 8
        %s260 = scalar_lea.vmem [#allocation4], %s259
        %p261 = pneg %p44
        %p262 = pneg %p41
        %p263 = pneg %p65
        %p264 = pneg %p62
        %p265 = pneg %p86
        %p266 = pneg %p83
        %p267 = pneg %p107
        %p268 = pneg %p104
        %p269 = pneg %p128
        %p270 = pneg %p125
        %p271 = pneg %p154
        %p272 = pneg %p151
        %s273 = sand.u32 %s141, 1
        %s274 = scalar_lea.sflag [#allocation6], %s273
        %s275 = sand.u32 %s141, 1
        %s276 = smul.addr %s275, 16
        %s277 = scalar_lea.vmem [#allocation10], %s276
        %vm279 = vcmask 581632
        %vm280 = vsmask.f32 256
        %vm281 = vmand %vm279, %vm280
        %v282 = vld [vmem:[#allocation2] sm:$0x1]
        %v283 = vsel %vm281, 0, %v282
        %284 = vst [vmem:[#allocation2] sm:$0x1] %v283
        %vm285 = vsmask.f32 7938
        %vm286 = vmand %vm279, %vm285
        %v287 = vld [vmem:[#allocation2 + $0x8] sm:$0x1]
        %v288 = vsel %vm286, 0, %v287
        %289 = vst [vmem:[#allocation2 + $0x8] sm:$0x1] %v288
        %vm290 = vcmask 27648
        %vm291 = vmand %vm290, %vm285
        %v292 = vld [vmem:[#allocation2] sm:$0xf]
        %v293 = vsel %vm291, 0, %v292
        %294 = vst [vmem:[#allocation2] sm:$0xf] %v293
        %vm295 = vcmask 27648
        %296 = vst.msk [vmem:[#allocation2 + $0x4] sm:$0xf] %vm295, 0
        %vm297 = vcmask 24576
        %vm298 = vmand %vm297, %vm280
        %v299 = vld [vmem:[#allocation2 + $0x8] sm:$0x1]
        %v300 = vsel %vm298, 0, %v299
        %301 = vst [vmem:[#allocation2 + $0x8] sm:$0x1] %v300
        %vm302 = vcmask 585248
        %vm303 = vmand %vm302, %vm285
        %v304 = vld [vmem:[#allocation2] sm:$0xf]
        %v305 = vsel %vm303, 0, %v304
        %306 = vst [vmem:[#allocation2] sm:$0xf] %v305
        %vm307 = vcmask 585248
        %308 = vst.msk [vmem:[#allocation2 + $0x4] sm:$0xf] %vm307, 0
        %vm309 = vcmask 582176
        %vm310 = vmand %vm309, %vm280
        %v311 = vld [vmem:[#allocation2 + $0x8] sm:$0x1]
        %v312 = vsel %vm310, 0, %v311
        %313 = vst [vmem:[#allocation2 + $0x8] sm:$0x1] %v312
        %vm314 = vcmask 1040384
        %vm315 = vmand %vm314, %vm280
        %vm316 = vcmask 126980
        %vm317 = vsmask.f32 4352
        %vm318 = vmand %vm316, %vm317
        %vm319 = vmor %vm318, %vm315
        %v320 = vld [vmem:[#allocation3] sm:$0x11]
        %v321 = vsel %vm319, 0, %v320
        %322 = vst [vmem:[#allocation3] sm:$0x11] %v321
        %vm323 = vmand %vm314, %vm285
        %vm324 = vsmask.f32 7954
        %vm325 = vmand %vm316, %vm324
        %vm326 = vmor %vm325, %vm323
        %v327 = vld [vmem:[#allocation3 + $0x10] sm:$0x11]
        %v328 = vsel %vm326, 0, %v327
        %329 = vst [vmem:[#allocation3 + $0x10] sm:$0x11] %v328
        %vm330 = vcmask 60416
        %vm331 = vmand %vm330, %vm285
        %v332 = vld [vmem:[#allocation3] sm:$0xf]
        %v333 = vsel %vm331, 0, %v332
        %334 = vst [vmem:[#allocation3] sm:$0xf] %v333
        %vm335 = vcmask 60416
        %336 = vst.msk [vmem:[#allocation3 + $0x8] sm:$0xf] %vm335, 0
        %vm337 = vcmask 57344
        %vm338 = vmand %vm337, %vm280
        %v339 = vld [vmem:[#allocation3 + $0x10] sm:$0x1]
        %v340 = vsel %vm338, 0, %v339
        %341 = vst [vmem:[#allocation3 + $0x10] sm:$0x1] %v340
        %vm342 = vcmask 126016
        %vm343 = vmand %vm342, %vm285
        %v344 = vld [vmem:[#allocation3 + $0x4] sm:$0xf]
        %v345 = vsel %vm343, 0, %v344
        %346 = vst [vmem:[#allocation3 + $0x4] sm:$0xf] %v345
        %vm347 = vcmask 126016
        %348 = vst.msk [vmem:[#allocation3 + $0xc] sm:$0xf] %vm347, 0
        %vm349 = vcmask 122944
        %vm350 = vmand %vm349, %vm280
        %v351 = vld [vmem:[#allocation3 + $0x14] sm:$0x1]
        %v352 = vsel %vm350, 0, %v351
        %353 = vst [vmem:[#allocation3 + $0x14] sm:$0x1] %v352
        %v354 = vld [vmem:[%s240] sm:$0xf]
        %v355 = vld [vmem:[%s240 + $0x4] sm:$0xf]
        %vm356 = vsmask.f32 4368
        %vm357 = vmor %vm280, %vm356
        %v359 = vshrl.u32 %v354, 16
        %v361 = vrot.slane %v359, 7
        %v362 = vshll.u32 %v354, 16
        %v364 = vor.u32 %v361, %v362
        %v365 = vrot.slane %v361, 4
        %v367 = vshrl.u32 %v355, 16
        %v369 = vrot.slane %v367, 7
        %v370 = vshll.u32 %v355, 16
        %v372 = vor.u32 %v369, %v370
        %v373 = vsel %vm357, %v365, %v372
        %v374 = vrot.slane %v369, 4
        %375 = vrot.lane.b32.xlu0 %v364, 4
        %v376 = vpop.permute.xlu0 %375
        %377 = vrot.lane.b32.xlu0 %v373, 4
        %v378 = vpop.permute.xlu0 %377
        %379 = vrot.lane.b32.xlu0 %v374, 4
        %v380 = vpop.permute.xlu0 %379
        %vm384 = vcmask 551968
        %vm385 = vmand %vm384, %vm285
        %v386 = vld [vmem:[#allocation2] sm:$0xf]
        %v387 = vsel %vm385, %v376, %v386
        %388 = vst [vmem:[#allocation2] sm:$0xf] %v387
        %vm389 = vcmask 551968
        %390 = vst.msk [vmem:[#allocation2 + $0x4] sm:$0xf] %vm389, %v378
        %vm391 = vcmask 548896
        %vm392 = vmand %vm391, %vm280
        %v393 = vld [vmem:[#allocation2 + $0x8] sm:$0x1]
        %v394 = vsel %vm392, %v380, %v393
        %395 = vst [vmem:[#allocation2 + $0x8] sm:$0x1] %v394
        %v396 = vld [vmem:[#allocation2] sm:$0xf]
        %v397 = vld [vmem:[#allocation2 + $0x4] sm:$0xf]
        %v398 = vld [vmem:[#allocation7] sm:$0xf]
        %v399 = vld [vmem:[#allocation7 + $0x4] sm:$0xf]
        %v400 = vld [vmem:[#allocation7 + $0x8] sm:$0xf]
        %v401 = vld [vmem:[#allocation7 + $0xc] sm:$0xf]
        %v402 = vld [vmem:[#allocation7 + $0x10] sm:$0xf]
        %v403 = vld [vmem:[#allocation7 + $0x14] sm:$0xf]
        %v404 = vld [vmem:[#allocation7 + $0x18] sm:$0xf]
        %v405 = vld [vmem:[#allocation7 + $0x1c] sm:$0xf]
        %v406 = vld [vmem:[#allocation7 + $0x20] sm:$0xf]
        %v407 = vld [vmem:[#allocation2 + $0x8] sm:$0x1]
        %s408 = scalar_lea.vmem [#allocation7], 36
        %v409 = vld [vmem:[%s408] sm:$0xf]
        %v410 = vld [vmem:[%s408 + $0x4] sm:$0xf]
        %v411 = vld [vmem:[%s408 + $0x8] sm:$0xf]
        %v412 = vld [vmem:[%s408 + $0xc] sm:$0xf]
        %v413 = vld [vmem:[%s408 + $0x10] sm:$0xf]
        %v414 = vld [vmem:[%s408 + $0x14] sm:$0xf]
        %v415 = vld [vmem:[%s408 + $0x18] sm:$0xf]
        %v416 = vld [vmem:[%s408 + $0x1c] sm:$0xf]
        %v417 = vld [vmem:[%s408 + $0x20] sm:$0xf]
        %v421 = vunpack.c.l.b16 %v396
        %v422 = vunpack.c.l.b16 %v397
        %v423 = vunpack.c.l.b16 %v407
        %v424 = vpack.c.b16 %v422, %v421
        %v425 = vpack.c.b16 %v423, %v423
        %vm426 = vsmask.f32 7424
        %v428 = vshrl.u32 %v424, 16
        %v430 = vshll.u32 %v424, 16
        %v432 = vrot.slane %v430, 1
        %v433 = vor.u32 %v428, %v432
        %v435 = vshll.u32 %v425, 16
        %v437 = vrot.slane %v435, 1
        %v438 = vsel %vm426, %v433, %v437
        %v448 = vunpack.c.l.b16 %v409
        %v449 = vunpack.c.l.b16 %v410
        %v450 = vunpack.c.l.b16 %v411
        %v451 = vunpack.c.l.b16 %v412
        %v452 = vunpack.c.l.b16 %v413
        %v453 = vunpack.c.l.b16 %v414
        %v454 = vunpack.c.l.b16 %v415
        %v455 = vunpack.c.l.b16 %v416
        %v456 = vunpack.c.l.b16 %v417
        %v457 = vpack.c.b16 %v449, %v448
        %v458 = vpack.c.b16 %v451, %v450
        %v459 = vpack.c.b16 %v453, %v452
        %v460 = vpack.c.b16 %v455, %v454
        %v461 = vpack.c.b16 %v456, %v456
        %vm466 = vcmask 588800
        %v468 = vsel %vm466, %v438, 0
        %vm470 = vcmask 1043456
        %v472 = vsel %vm470, %v461, 0
        %474 = vmatpush.bf16.msra.mxu0 0
        %475 = vmatpush.bf16.msra.mxu0 0
        %476 = vmatpush.bf16.msra.mxu0 0
        %477 = vmatpush.bf16.msra.mxu0 %v472
        %478 = vmatpush.bf16.msra.mxu0 %v460
        %479 = vmatpush.bf16.msra.mxu0 %v459
        %480 = vmatpush.bf16.msra.mxu0 %v458
        %481 = vmatpush.bf16.msra.mxu0 %v457
        %482 = vmatmul.bf16.gmra.mxu0 %v468
        %v483 = vpop.f32.mrf.mxu0
        %v484 = vadd.f32 0.0, %v483
        %v485 = vpop.f32.mrf.mxu0
        %v486 = vadd.f32 0.0, %v485
        %487 = vdwg.mxu0
        %v497 = vunpack.c.l.b16 %v398
        %v498 = vunpack.c.l.b16 %v399
        %v499 = vunpack.c.l.b16 %v400
        %v500 = vunpack.c.l.b16 %v401
        %v501 = vunpack.c.l.b16 %v402
        %v502 = vunpack.c.l.b16 %v403
        %v503 = vunpack.c.l.b16 %v404
        %v504 = vunpack.c.l.b16 %v405
        %v505 = vunpack.c.l.b16 %v406
        %v506 = vpack.c.b16 %v498, %v497
        %v507 = vpack.c.b16 %v500, %v499
        %v508 = vpack.c.b16 %v502, %v501
        %v509 = vpack.c.b16 %v504, %v503
        %v510 = vpack.c.b16 %v505, %v505
        %v515 = vsel %vm466, %v424, 0
        %v518 = vsel %vm470, %v510, 0
        %520 = vmatpush.bf16.msra.mxu0 0
        %521 = vmatpush.bf16.msra.mxu0 0
        %522 = vmatpush.bf16.msra.mxu0 0
        %523 = vmatpush.bf16.msra.mxu0 %v518
        %524 = vmatpush.bf16.msra.mxu0 %v509
        %525 = vmatpush.bf16.msra.mxu0 %v508
        %526 = vmatpush.bf16.msra.mxu0 %v507
        %527 = vmatpush.bf16.msra.mxu0 %v506
        %528 = vmatmul.bf16.gmra.mxu0 %v515
        %v529 = vpop.f32.mrf.mxu0
        %v530 = vadd.f32 %v484, %v529
        %v531 = vpop.f32.mrf.mxu0
        %v532 = vadd.f32 %v486, %v531
        %533 = vdwg.mxu0
        %v534 = vld [vmem:[#allocation2] sm:$0xe]
        %s535 = scalar_lea.vmem [#allocation7], 72
        %v536 = vld [vmem:[%s535] sm:$0xf]
        %v537 = vld [vmem:[%s535 + $0x4] sm:$0xf]
        %v538 = vld [vmem:[%s535 + $0x8] sm:$0xf]
        %v539 = vld [vmem:[%s535 + $0xc] sm:$0xf]
        %v540 = vld [vmem:[%s535 + $0x10] sm:$0xf]
        %v541 = vld [vmem:[%s535 + $0x14] sm:$0xf]
        %v542 = vld [vmem:[%s535 + $0x18] sm:$0xf]
        %v543 = vld [vmem:[%s535 + $0x1c] sm:$0xf]
        %v544 = vld [vmem:[%s535 + $0x20] sm:$0xf]
        %v546 = vunpack.c.l.b16 %v534
        %v547 = vpack.c.b16 %v422, %v546
        %vm548 = vcmask 1046528
        %v549 = vrot.slane %v547, 1
        %v550 = vrot.slane %v425, 1
        %v551 = vsel %vm548, %v549, %v550
        %v561 = vunpack.c.l.b16 %v536
        %v562 = vunpack.c.l.b16 %v537
        %v563 = vunpack.c.l.b16 %v538
        %v564 = vunpack.c.l.b16 %v539
        %v565 = vunpack.c.l.b16 %v540
        %v566 = vunpack.c.l.b16 %v541
        %v567 = vunpack.c.l.b16 %v542
        %v568 = vunpack.c.l.b16 %v543
        %v569 = vunpack.c.l.b16 %v544
        %v570 = vpack.c.b16 %v562, %v561
        %v571 = vpack.c.b16 %v564, %v563
        %v572 = vpack.c.b16 %v566, %v565
        %v573 = vpack.c.b16 %v568, %v567
        %v574 = vpack.c.b16 %v569, %v569
        %v580 = vsel %vm466, %v551, 0
        %v583 = vsel %vm470, %v574, 0
        %585 = vmatpush.bf16.msra.mxu0 0
        %586 = vmatpush.bf16.msra.mxu0 0
        %587 = vmatpush.bf16.msra.mxu0 0
        %588 = vmatpush.bf16.msra.mxu0 %v583
        %589 = vmatpush.bf16.msra.mxu0 %v573
        %590 = vmatpush.bf16.msra.mxu0 %v572
        %591 = vmatpush.bf16.msra.mxu0 %v571
        %592 = vmatpush.bf16.msra.mxu0 %v570
        %593 = vmatmul.bf16.gmra.mxu0 %v580
        %v594 = vpop.f32.mrf.mxu0
        %v595 = vadd.f32 0.0, %v594
        %v596 = vpop.f32.mrf.mxu0
        %v597 = vadd.f32 0.0, %v596
        %598 = vdwg.mxu0
        %v599 = vadd.f32 %v530, %v595
        %v600 = vadd.f32 %v532, %v597
        %v601 = vld [vmem:[%s2] sm:$0x1]
        %v603 = vperm.slane %v601, 0
        %v605 = vadd.f32 %v599, %v603
        %v606 = vadd.f32 %v600, %v603
        %v607 = vmax.f32 %v605, 0.0
        %v608 = vmax.f32 %v606, 0.0
        %v609 = vpack.c.bf16 %v607, %v607
        %v610 = vpack.c.bf16 %v608, %v608
        %v612 = vshrl.u32 %v609, 16
        %v614 = vrot.slane %v612, 7
        %v615 = vshll.u32 %v609, 16
        %v617 = vor.u32 %v614, %v615
        %v618 = vrot.slane %v614, 4
        %v620 = vshrl.u32 %v610, 16
        %v622 = vrot.slane %v620, 7
        %v623 = vshll.u32 %v610, 16
        %v625 = vor.u32 %v622, %v623
        %v626 = vsel %vm357, %v618, %v625
        %v627 = vrot.slane %v622, 4
        %628 = vrot.lane.b32.xlu0 %v617, 8
        %v629 = vpop.permute.xlu0 %628
        %630 = vrot.lane.b32.xlu0 %v626, 8
        %v631 = vpop.permute.xlu0 %630
        %632 = vrot.lane.b32.xlu0 %v627, 8
        %v633 = vpop.permute.xlu0 %632
        %v634 = vrot.slane %v629, 4
        %v635 = vrot.slane %v631, 4
        %v636 = vrot.slane %v633, 4
        %vm637 = vcmask 64512
        %v638 = vsel %vm637, %v634, %v629
        %v639 = vsel %vm637, %v635, %v631
        %v640 = vsel %vm637, %v636, %v633
        %vm644 = vcmask 1043520
        %vm645 = vmand %vm644, %vm285
        %vm646 = vcmask 64516
        %vm647 = vmand %vm646, %vm324
        %vm648 = vmor %vm647, %vm645
        %v649 = vld [vmem:[#allocation3] sm:$0xff]
        %v650 = vsel %vm648, %v638, %v649
        %651 = vst [vmem:[#allocation3] sm:$0xff] %v650
        %vm652 = vcmask 1043520
        %vm653 = vcmask 64516
        %vm654 = vmor %vm653, %vm652
        %655 = vst.msk [vmem:[#allocation3 + $0x8] sm:$0xff] %vm654, %v639
        %vm656 = vcmask 1040448
        %vm657 = vmand %vm656, %vm280
        %vm658 = vcmask 61444
        %vm659 = vmand %vm658, %vm317
        %vm660 = vmor %vm659, %vm657
        %v661 = vld [vmem:[#allocation3 + $0x10] sm:$0x11]
        %v662 = vsel %vm660, %v640, %v661
        %663 = vst [vmem:[#allocation3 + $0x10] sm:$0x11] %v662
        %v664 = vld [vmem:[#allocation3] sm:$0xff]
        %v665 = vld [vmem:[#allocation3 + $0x8] sm:$0xff]
        %v666 = vld [vmem:[#allocation9] sm:$0xf]
        %v667 = vld [vmem:[#allocation9 + $0x4] sm:$0xf]
        %v668 = vld [vmem:[#allocation9 + $0x8] sm:$0xf]
        %v669 = vld [vmem:[#allocation9 + $0xc] sm:$0xf]
        %v670 = vld [vmem:[#allocation9 + $0x10] sm:$0xf]
        %v671 = vld [vmem:[#allocation9 + $0x14] sm:$0xf]
        %v672 = vld [vmem:[#allocation9 + $0x18] sm:$0xf]
        %v673 = vld [vmem:[#allocation9 + $0x1c] sm:$0xf]
        %v674 = vld [vmem:[#allocation9 + $0x20] sm:$0xf]
        %v675 = vld [vmem:[#allocation9 + $0x24] sm:$0xf]
        %v676 = vld [vmem:[#allocation9 + $0x28] sm:$0xf]
        %v677 = vld [vmem:[#allocation9 + $0x2c] sm:$0xf]
        %v678 = vld [vmem:[#allocation9 + $0x30] sm:$0xf]
        %v679 = vld [vmem:[#allocation9 + $0x34] sm:$0xf]
        %v680 = vld [vmem:[#allocation9 + $0x38] sm:$0xf]
        %v681 = vld [vmem:[#allocation9 + $0x3c] sm:$0xf]
        %v682 = vld [vmem:[#allocation9 + $0x40] sm:$0xf]
        %v683 = vld [vmem:[#allocation9 + $0x44] sm:$0xf]
        %v684 = vld [vmem:[#allocation3 + $0x10] sm:$0x11]
        %s685 = scalar_lea.vmem [#allocation9], 72
        %v686 = vld [vmem:[%s685] sm:$0xf]
        %v687 = vld [vmem:[%s685 + $0x4] sm:$0xf]
        %v688 = vld [vmem:[%s685 + $0x8] sm:$0xf]
        %v689 = vld [vmem:[%s685 + $0xc] sm:$0xf]
        %v690 = vld [vmem:[%s685 + $0x10] sm:$0xf]
        %v691 = vld [vmem:[%s685 + $0x14] sm:$0xf]
        %v692 = vld [vmem:[%s685 + $0x18] sm:$0xf]
        %v693 = vld [vmem:[%s685 + $0x1c] sm:$0xf]
        %v694 = vld [vmem:[%s685 + $0x20] sm:$0xf]
        %v695 = vld [vmem:[%s685 + $0x24] sm:$0xf]
        %v696 = vld [vmem:[%s685 + $0x28] sm:$0xf]
        %v697 = vld [vmem:[%s685 + $0x2c] sm:$0xf]
        %v698 = vld [vmem:[%s685 + $0x30] sm:$0xf]
        %v699 = vld [vmem:[%s685 + $0x34] sm:$0xf]
        %v700 = vld [vmem:[%s685 + $0x38] sm:$0xf]
        %v701 = vld [vmem:[%s685 + $0x3c] sm:$0xf]
        %v702 = vld [vmem:[%s685 + $0x40] sm:$0xf]
        %v703 = vld [vmem:[%s685 + $0x44] sm:$0xf]
        %v707 = vunpack.c.l.b16 %v664
        %v708 = vunpack.c.h.b16 %v664
        %v709 = vunpack.c.l.b16 %v665
        %v710 = vunpack.c.h.b16 %v665
        %v711 = vunpack.c.l.b16 %v684
        %v712 = vunpack.c.h.b16 %v684
        %v713 = vpack.c.b16 %v709, %v707
        %v714 = vpack.c.b16 %v710, %v708
        %v715 = vpack.c.b16 %v711, %v711
        %v716 = vpack.c.b16 %v712, %v712
        %v718 = vshrl.u32 %v713, 16
        %v720 = vshll.u32 %v713, 16
        %v722 = vrot.slane %v720, 1
        %v723 = vor.u32 %v718, %v722
        %v725 = vshll.u32 %v715, 16
        %v727 = vrot.slane %v725, 1
        %v728 = vsel %vm426, %v723, %v727
        %v730 = vshrl.u32 %v714, 16
        %v732 = vshll.u32 %v714, 16
        %v734 = vrot.slane %v732, 1
        %v735 = vor.u32 %v730, %v734
        %v737 = vshll.u32 %v716, 16
        %v739 = vrot.slane %v737, 1
        %v740 = vsel %vm426, %v735, %v739
        %v760 = vunpack.c.l.b16 %v686
        %v761 = vunpack.c.l.b16 %v687
        %v762 = vunpack.c.l.b16 %v688
        %v763 = vunpack.c.l.b16 %v689
        %v764 = vunpack.c.l.b16 %v690
        %v765 = vunpack.c.l.b16 %v691
        %v766 = vunpack.c.l.b16 %v692
        %v767 = vunpack.c.l.b16 %v693
        %v768 = vunpack.c.l.b16 %v694
        %v769 = vunpack.c.l.b16 %v695
        %v770 = vunpack.c.l.b16 %v696
        %v771 = vunpack.c.l.b16 %v697
        %v772 = vunpack.c.l.b16 %v698
        %v773 = vunpack.c.l.b16 %v699
        %v774 = vunpack.c.l.b16 %v700
        %v775 = vunpack.c.l.b16 %v701
        %v776 = vunpack.c.l.b16 %v702
        %v777 = vunpack.c.l.b16 %v703
        %v778 = vpack.c.b16 %v761, %v760
        %v779 = vpack.c.b16 %v763, %v762
        %v780 = vpack.c.b16 %v765, %v764
        %v781 = vpack.c.b16 %v767, %v766
        %v782 = vpack.c.b16 %v769, %v768
        %v783 = vpack.c.b16 %v771, %v770
        %v784 = vpack.c.b16 %v773, %v772
        %v785 = vpack.c.b16 %v775, %v774
        %v786 = vpack.c.b16 %v777, %v776
        %vm796 = vcmask 130048
        %v798 = vsel %vm796, %v740, 0
        %800 = vmatpush.bf16.msra.mxu0 %v785
        %801 = vmatpush.bf16.msra.mxu0 %v784
        %802 = vmatpush.bf16.msra.mxu0 %v783
        %803 = vmatpush.bf16.msra.mxu0 %v782
        %804 = vmatpush.bf16.msra.mxu0 %v781
        %805 = vmatpush.bf16.msra.mxu0 %v780
        %806 = vmatpush.bf16.msra.mxu0 %v779
        %807 = vmatpush.bf16.msra.mxu0 %v778
        %808 = vmatmul.bf16.gmra.mxu0 %v728
        %v809 = vpop.f32.mrf.mxu0
        %v810 = vadd.f32 0.0, %v809
        %v811 = vpop.f32.mrf.mxu0
        %v812 = vadd.f32 0.0, %v811
        %813 = vdwg.mxu0
        %814 = vmatpush.bf16.msra.mxu0 0
        %815 = vmatpush.bf16.msra.mxu0 0
        %816 = vmatpush.bf16.msra.mxu0 0
        %817 = vmatpush.bf16.msra.mxu0 0
        %818 = vmatpush.bf16.msra.mxu0 0
        %819 = vmatpush.bf16.msra.mxu0 0
        %820 = vmatpush.bf16.msra.mxu0 0
        %821 = vmatpush.bf16.msra.mxu0 %v786
        %822 = vmatmul.bf16.gmra.mxu0 %v798
        %v823 = vpop.f32.mrf.mxu0
        %v824 = vadd.f32 %v810, %v823
        %v825 = vpop.f32.mrf.mxu0
        %v826 = vadd.f32 %v812, %v825
        %827 = vdwg.mxu0
        %v847 = vunpack.c.l.b16 %v666
        %v848 = vunpack.c.l.b16 %v667
        %v849 = vunpack.c.l.b16 %v668
        %v850 = vunpack.c.l.b16 %v669
        %v851 = vunpack.c.l.b16 %v670
        %v852 = vunpack.c.l.b16 %v671
        %v853 = vunpack.c.l.b16 %v672
        %v854 = vunpack.c.l.b16 %v673
        %v855 = vunpack.c.l.b16 %v674
        %v856 = vunpack.c.l.b16 %v675
        %v857 = vunpack.c.l.b16 %v676
        %v858 = vunpack.c.l.b16 %v677
        %v859 = vunpack.c.l.b16 %v678
        %v860 = vunpack.c.l.b16 %v679
        %v861 = vunpack.c.l.b16 %v680
        %v862 = vunpack.c.l.b16 %v681
        %v863 = vunpack.c.l.b16 %v682
        %v864 = vunpack.c.l.b16 %v683
        %v865 = vpack.c.b16 %v848, %v847
        %v866 = vpack.c.b16 %v850, %v849
        %v867 = vpack.c.b16 %v852, %v851
        %v868 = vpack.c.b16 %v854, %v853
        %v869 = vpack.c.b16 %v856, %v855
        %v870 = vpack.c.b16 %v858, %v857
        %v871 = vpack.c.b16 %v860, %v859
        %v872 = vpack.c.b16 %v862, %v861
        %v873 = vpack.c.b16 %v864, %v863
        %v883 = vsel %vm796, %v714, 0
        %885 = vmatpush.bf16.msra.mxu0 %v872
        %886 = vmatpush.bf16.msra.mxu0 %v871
        %887 = vmatpush.bf16.msra.mxu0 %v870
        %888 = vmatpush.bf16.msra.mxu0 %v869
        %889 = vmatpush.bf16.msra.mxu0 %v868
        %890 = vmatpush.bf16.msra.mxu0 %v867
        %891 = vmatpush.bf16.msra.mxu0 %v866
        %892 = vmatpush.bf16.msra.mxu0 %v865
        %893 = vmatmul.bf16.gmra.mxu0 %v713
        %v894 = vpop.f32.mrf.mxu0
        %v895 = vadd.f32 %v824, %v894
        %v896 = vpop.f32.mrf.mxu0
        %v897 = vadd.f32 %v826, %v896
        %898 = vdwg.mxu0
        %899 = vmatpush.bf16.msra.mxu0 0
        %900 = vmatpush.bf16.msra.mxu0 0
        %901 = vmatpush.bf16.msra.mxu0 0
        %902 = vmatpush.bf16.msra.mxu0 0
        %903 = vmatpush.bf16.msra.mxu0 0
        %904 = vmatpush.bf16.msra.mxu0 0
        %905 = vmatpush.bf16.msra.mxu0 0
        %906 = vmatpush.bf16.msra.mxu0 %v873
        %907 = vmatmul.bf16.gmra.mxu0 %v883
        %v908 = vpop.f32.mrf.mxu0
        %v909 = vadd.f32 %v895, %v908
        %v910 = vpop.f32.mrf.mxu0
        %v911 = vadd.f32 %v897, %v910
        %912 = vdwg.mxu0
        %v913 = vld [vmem:[#allocation3] sm:$0xee]
        %s914 = scalar_lea.vmem [#allocation9], 144
        %v915 = vld [vmem:[%s914] sm:$0xf]
        %v916 = vld [vmem:[%s914 + $0x4] sm:$0xf]
        %v917 = vld [vmem:[%s914 + $0x8] sm:$0xf]
        %v918 = vld [vmem:[%s914 + $0xc] sm:$0xf]
        %v919 = vld [vmem:[%s914 + $0x10] sm:$0xf]
        %v920 = vld [vmem:[%s914 + $0x14] sm:$0xf]
        %v921 = vld [vmem:[%s914 + $0x18] sm:$0xf]
        %v922 = vld [vmem:[%s914 + $0x1c] sm:$0xf]
        %v923 = vld [vmem:[%s914 + $0x20] sm:$0xf]
        %v924 = vld [vmem:[%s914 + $0x24] sm:$0xf]
        %v925 = vld [vmem:[%s914 + $0x28] sm:$0xf]
        %v926 = vld [vmem:[%s914 + $0x2c] sm:$0xf]
        %v927 = vld [vmem:[%s914 + $0x30] sm:$0xf]
        %v928 = vld [vmem:[%s914 + $0x34] sm:$0xf]
        %v929 = vld [vmem:[%s914 + $0x38] sm:$0xf]
        %v930 = vld [vmem:[%s914 + $0x3c] sm:$0xf]
        %v931 = vld [vmem:[%s914 + $0x40] sm:$0xf]
        %v932 = vld [vmem:[%s914 + $0x44] sm:$0xf]
        %v934 = vunpack.c.l.b16 %v913
        %v935 = vunpack.c.h.b16 %v913
        %v936 = vpack.c.b16 %v709, %v934
        %v937 = vpack.c.b16 %v710, %v935
        %v938 = vrot.slane %v936, 1
        %v939 = vrot.slane %v715, 1
        %v940 = vsel %vm548, %v938, %v939
        %v941 = vrot.slane %v937, 1
        %v942 = vrot.slane %v716, 1
        %v943 = vsel %vm548, %v941, %v942
        %v963 = vunpack.c.l.b16 %v915
        %v964 = vunpack.c.l.b16 %v916
        %v965 = vunpack.c.l.b16 %v917
        %v966 = vunpack.c.l.b16 %v918
        %v967 = vunpack.c.l.b16 %v919
        %v968 = vunpack.c.l.b16 %v920
        %v969 = vunpack.c.l.b16 %v921
        %v970 = vunpack.c.l.b16 %v922
        %v971 = vunpack.c.l.b16 %v923
        %v972 = vunpack.c.l.b16 %v924
        %v973 = vunpack.c.l.b16 %v925
        %v974 = vunpack.c.l.b16 %v926
        %v975 = vunpack.c.l.b16 %v927
        %v976 = vunpack.c.l.b16 %v928
        %v977 = vunpack.c.l.b16 %v929
        %v978 = vunpack.c.l.b16 %v930
        %v979 = vunpack.c.l.b16 %v931
        %v980 = vunpack.c.l.b16 %v932
        %v981 = vpack.c.b16 %v964, %v963
        %v982 = vpack.c.b16 %v966, %v965
        %v983 = vpack.c.b16 %v968, %v967
        %v984 = vpack.c.b16 %v970, %v969
        %v985 = vpack.c.b16 %v972, %v971
        %v986 = vpack.c.b16 %v974, %v973
        %v987 = vpack.c.b16 %v976, %v975
        %v988 = vpack.c.b16 %v978, %v977
        %v989 = vpack.c.b16 %v980, %v979
        %v1000 = vsel %vm796, %v943, 0
        %1002 = vmatpush.bf16.msra.mxu0 %v988
        %1003 = vmatpush.bf16.msra.mxu0 %v987
        %1004 = vmatpush.bf16.msra.mxu0 %v986
        %1005 = vmatpush.bf16.msra.mxu0 %v985
        %1006 = vmatpush.bf16.msra.mxu0 %v984
        %1007 = vmatpush.bf16.msra.mxu0 %v983
        %1008 = vmatpush.bf16.msra.mxu0 %v982
        %1009 = vmatpush.bf16.msra.mxu0 %v981
        %1010 = vmatmul.bf16.gmra.mxu0 %v940
        %v1011 = vpop.f32.mrf.mxu0
        %v1012 = vadd.f32 0.0, %v1011
        %v1013 = vpop.f32.mrf.mxu0
        %v1014 = vadd.f32 0.0, %v1013
        %1015 = vdwg.mxu0
        %1016 = vmatpush.bf16.msra.mxu0 0
        %1017 = vmatpush.bf16.msra.mxu0 0
        %1018 = vmatpush.bf16.msra.mxu0 0
        %1019 = vmatpush.bf16.msra.mxu0 0
        %1020 = vmatpush.bf16.msra.mxu0 0
        %1021 = vmatpush.bf16.msra.mxu0 0
        %1022 = vmatpush.bf16.msra.mxu0 0
        %1023 = vmatpush.bf16.msra.mxu0 %v989
        %1024 = vmatmul.bf16.gmra.mxu0 %v1000
        %v1025 = vpop.f32.mrf.mxu0
        %v1026 = vadd.f32 %v1012, %v1025
        %v1027 = vpop.f32.mrf.mxu0
        %v1028 = vadd.f32 %v1014, %v1027
        %1029 = vdwg.mxu0
        %v1030 = vadd.f32 %v909, %v1026
        %v1031 = vadd.f32 %v911, %v1028
        %v1032 = vld [vmem:[%s4] sm:$0x1]
        %v1034 = vperm.slane %v1032, 0
        %v1036 = vadd.f32 %v1030, %v1034
        %v1037 = vadd.f32 %v1031, %v1034
        %v1038 = vmax.f32 %v1036, 0.0
        %v1039 = vmax.f32 %v1037, 0.0
        %1040 = vst [vmem:[%s277] sm:$0xff] %v1038
        %1041 = vst [vmem:[%s277 + $0x8] sm:$0xff] %v1039
        %s1042 = sand.u32 %s141, 1
        %s1043 = scalar_lea.sflag [#allocation6], %s1042
        %s1044 = sand.u32 %s141, 1
        %s1045 = smul.addr %s1044, 16
        %s1046 = scalar_lea.vmem [#allocation10], %s1045
        // Predicated region
        $region53: #{tpu_custom_call.1} parent=39 // pred_check
          %p1047 = pneg %p151
        $region54: #{tpu_custom_call.1} parent=39 // pred_check_branch
          %1049 = sbr.rel (%p1047) target = $region56
        $region55: #{tpu_custom_call.1} parent=39 // pred_region
          %1051 = vsyncadd %s1043, 0
          %s1052 = smul.addr %s23, 2
          %s1053 = smul.addr %s1052, 8
          %s1054 = scalar_lea.hbm %s5, %s1053
          %s1055 = sshll.u32 %s1046, 4
          %s1056 = int_to_ptr.vmem [resolvable:$true] %s1055
          %s1057 = sshll.u32 %s1054, 4
          %s1058 = int_to_ptr.hbm [resolvable:$true] %s1057
          %1063 = dma.vmem_to_hbm [thread:$0]  %s1056, 256, %s1058, %s1043, 128, 128, 8
        $region56: #{tpu_custom_call.1} parent=39 // pred_fallthru
          _
      $region40: #{tpu_custom_call.1} parent=5 // pred_fallthru
        _
      %p1064 = scmp.le.s32.totalorder 2, %s18
      // Predicated region
      $region57: #{tpu_custom_call.1} parent=5 // pred_check
        %p1065 = pneg %p1064
      $region58: #{tpu_custom_call.1} parent=5 // pred_check_branch
        %1067 = sbr.rel (%p1065) target = $region60
      $region59: #{tpu_custom_call.1} parent=5 // pred_region
        %s1068 = ssub.s32 %s18, 2
        // Predicated region
        $region61: #{tpu_custom_call.1} parent=59 // pred_check
          %p1069 = pneg %p157
        $region62: #{tpu_custom_call.1} parent=59 // pred_check_branch
          %1071 = sbr.rel (%p1069) target = $region64
        $region63: #{tpu_custom_call.1} parent=59 // pred_region
          %s1072 = sand.u32 %s142, 1
          %s1073 = scalar_lea.sflag [#allocation6], %s1072
          %s1074 = sand.u32 %s142, 1
          %s1075 = smul.addr %s1074, 16
          %s1076 = scalar_lea.vmem [#allocation10], %s1075
          %1078 = dma.done %s1073, 256
        $region64: #{tpu_custom_call.1} parent=59 // pred_fallthru
          _
      $region60: #{tpu_custom_call.1} parent=5 // pred_fallthru
        _
    $region6: #{tpu_custom_call.1} parent=1 // loop_footer
      %s22 = sadd.s32 1, %s18
    $region7: #{tpu_custom_call.1} parent=1 // loop_footer_branch
      %17 = sbr.rel target = $region3
    $region8: #{tpu_custom_call.1} parent=1 // loop_exit
      _
    %1079 = vsyncpa [#allocation5], 1
    %s1080 = scalar_lea.sflag [#allocation5], 1
    %1081 = vsyncpa %s1080, 1
    %1082 = vsyncpa [#allocation8], 1
    %1083 = vsyncpa [#allocation6], 1
    %s1084 = scalar_lea.sflag [#allocation6], 1
    %1085 = vsyncpa %s1084, 1

</llo_original>
